<compile_context>
chip_gen: v7x
topology: tpu7x:2x2x1
jax: 0.10.0
libtpu: 0.0.40
codegen_flags: <defaults>
</compile_context>

<pallas_src>
import math

import jax
import jax.numpy as jnp
from jax import lax
from jax.experimental import pallas as pl
from jax.experimental.pallas import tpu as pltpu

# ----------------------- small but complete configuration -------------------
LATENT_DIM = 4
N_CLASSES = 3
SPATIAL_DIMS = 2                      # 2-D instantiation of the module
LATENT_LEVELS = 2
RESOLUTION_LEVELS = 3
LVL_DIFF = RESOLUTION_LEVELS - LATENT_LEVELS
FEATURE_CHANNELS = (8, 16, 16)
IN_EPS = 1e-5
CIN_PAD = 8        # latent channels zero-padded 4 -> 8 so sublane tiles stay 8-aligned
N_CONV_BLOCKS = 9  # number of Convolution(k=3, IN, PReLU) blocks in this instantiation
# PReLU alpha index per block:
#   0,1: post_z level0   2: res_inc level0   3,4: post_z level1   5: res_inc level1
#   6: ups_conv          7,8: comb_conv


# ---------------------- start-up hardware calibration probes -----------------
# pltpu.roll convention: True  => pltpu.roll(x, s)[..., i] == x[..., (i - s) % n]
# (jnp.roll semantics).  Probed once in __main__ so tap shifts are robust.
_ROLL_LIKE_JNP = True


def detect_roll_convention():
    """Tiny eager pallas_call probing pltpu.roll's rotation direction (call outside jit)."""
    global _ROLL_LIKE_JNP

    def probe(x_ref, o_ref):
        o_ref[...] = pltpu.roll(x_ref[...], 1, axis=1)

    x = jnp.arange(8 * 128, dtype=jnp.float32).reshape(8, 128)
    y = pl.pallas_call(probe, out_shape=jax.ShapeDtypeStruct((8, 128), jnp.float32))(x)
    _ROLL_LIKE_JNP = bool(y[0, 0] == x[0, -1])
    return _ROLL_LIKE_JNP


def detect_mxu_f32_highprec():
    """True if the in-kernel f32 matmul path keeps f32 operand precision
    (multi-pass MXU emulation); False if operands are truncated to bf16."""
    def probe(a_ref, b_ref, o_ref):
        o_ref[...] = jnp.dot(a_ref[...], b_ref[...], preferred_element_type=jnp.float32)

    n = 128
    a = jnp.eye(n, dtype=jnp.float32) * jnp.float32(1.0 + 1e-6)  # 1+1e-6 rounds to 1.0 in bf16
    b = jnp.eye(n, dtype=jnp.float32)
    out = pl.pallas_call(probe, out_shape=jax.ShapeDtypeStruct((n, n), jnp.float32))(a, b)
    return bool(jnp.abs(out[0, 0] - (1.0 + 1e-6)) < 1e-7)


# --------------------- precomputed constant operators ------------------------
def _upsample_matrix(s):
    """(s*s, 4*s*s) matrix for bilinear x2 upsampling (align_corners=False) of a
    row-major flattened s x s image: out = act(C, s*s) @ U."""
    a = [[0.0] * (2 * s) for _ in range(s)]
    for k in range(s):
        a[k][2 * k] += 0.75
        a[max(k - 1, 0)][2 * k] += 0.25          # out[2k]   : src = k - 0.25 (clamped)
        a[k][2 * k + 1] += 0.75
        a[min(k + 1, s - 1)][2 * k + 1] += 0.25  # out[2k+1] : src = k + 0.25 (clamped)
    a = jnp.array(a, jnp.float32)                # (s, 2s) 1-D stencil
    return jnp.kron(a, a)                        # separable 2-D operator


def _tap_masks(s):
    """(9, 1, s*s) validity masks: 1 where tap (dy,dx) stays inside the image
    (reproduces zero padding when applied to the lane-rotated activation)."""
    rows = []
    for dy in range(3):
        for dx in range(3):
            rows.append([1.0 if (0 <= y + dy - 1 < s and 0 <= x + dx - 1 < s) else 0.0
                         for y in range(s) for x in range(s)])
    return jnp.array(rows, jnp.float32).reshape(9, 1, s * s)


# ------------------------------ fused kernel ---------------------------------
def _make_phiseg_kernel(s_small, s_mid, s_big, roll_like_jnp):
    """Whole-decoder kernel for one batch element.  Activations live in VMEM in a
    (C, H*W) channels-on-sublanes / spatial-on-lanes layout."""

    def conv3x3_in_prelu(x, w_ref, alpha, masks_ref, side):
        """Conv2d(k=3, p=1, no bias) + InstanceNorm2d(affine=False) + PReLU.

        x        : (Cin, HW)        activation (flattened NCHW)
        w_ref    : (9, Cout, Cin)   weights, tap index t = 3*dy + dx
        masks_ref: (9, 1, HW)       tap validity masks (== zero padding)
        """
        cin, hw = x.shape
        use_roll = (hw % 128 == 0)   # lane rotates only on lane-dims that are 128-multiples
        xx = None if use_roll else jnp.concatenate([x, x], axis=1)   # tiny (8x8 level only)

        acc = None
        for dy in range(3):
            for dx in range(3):
                t = 3 * dy + dx
                off = (dy - 1) * side + (dx - 1)
                if off == 0:
                    tap = x                                      # centre tap, mask == 1
                elif use_roll:
                    shift = (-off if roll_like_jnp else off) % hw
                    # XLU rotate; wrapped pixels are exactly out-of-image taps -> masked.
                    tap = pltpu.roll(x, shift, axis=1) * masks_ref[t]
                else:
                    s0 = off % hw
                    tap = xx[:, s0:s0 + hw] * masks_ref[t]
                part = jnp.dot(w_ref[t], tap, preferred_element_type=jnp.float32)
                acc = part if acc is None else acc + part

        # Conv bias omitted on purpose: with a non-affine InstanceNorm right after,
        # a per-channel bias is exactly cancelled by the mean subtraction.
        mean = jnp.mean(acc, axis=1, keepdims=True)
        mean_sq = jnp.mean(acc * acc, axis=1, keepdims=True)
        var = jnp.maximum(mean_sq - mean * mean, 0.0)
        scale = lax.rsqrt(var + IN_EPS)
        y = acc * scale - mean * scale
        # Dropout(p=0.1) between norm and act: eval-mode identity (see TODO at top).
        return jnp.where(y >= 0.0, y, alpha * y)

    def kernel(z0_ref, z1_ref,
               w_pz00_ref, w_pz01_ref, w_ri0_ref,
               w_pz10_ref, w_pz11_ref, w_ri1_ref,
               w_ups_ref, w_cb0_ref, w_cb1_ref,
               wh0_ref, bh0_ref, wh1_ref, bh1_ref,
               u_small_ref, u_mid_ref,
               m_small_ref, m_mid_ref, m_big_ref,
               alpha_ref,
               pred0_ref, pred1_ref):
        a = alpha_ref  # (9,) SMEM scalars (PReLU slopes)

        # ---- level 1 (coarse) branch: post_z convs + increase_resolution -------
        x = z1_ref[0]                                                    # (8, s_small^2)
        x = conv3x3_in_prelu(x, w_pz10_ref, a[3], m_small_ref, s_small)
        x = conv3x3_in_prelu(x, w_pz11_ref, a[4], m_small_ref, s_small)
        x = jnp.dot(x, u_small_ref[...], preferred_element_type=jnp.float32)  # bilinear x2
        post_c1 = conv3x3_in_prelu(x, w_ri1_ref, a[5], m_mid_ref, s_mid)

        # fused 1x1 prediction head of the coarsest level
        p1 = jnp.dot(wh1_ref[...], post_c1,
                     preferred_element_type=jnp.float32) + bh1_ref[...]
        pred1_ref[...] = p1.reshape(pred1_ref.shape)

        # ---- level 0 (fine) branch: post_z convs + increase_resolution ---------
        y = z0_ref[0]                                                    # (8, s_mid^2)
        y = conv3x3_in_prelu(y, w_pz00_ref, a[0], m_mid_ref, s_mid)
        y = conv3x3_in_prelu(y, w_pz01_ref, a[1], m_mid_ref, s_mid)
        y = jnp.dot(y, u_mid_ref[...], preferred_element_type=jnp.float32)    # bilinear x2
        post_z0 = conv3x3_in_prelu(y, w_ri0_ref, a[2], m_big_ref, s_big)

        # ---- upstream path: upsample post_c1, ups_conv, concat, comb convs -----
        u = jnp.dot(post_c1, u_mid_ref[...], preferred_element_type=jnp.float32)
        u = conv3x3_in_prelu(u, w_ups_ref, a[6], m_big_ref, s_big)
        cc = jnp.concatenate([post_z0, u], axis=0)       # torch.cat(dim=1) in (C, HW)
        c = conv3x3_in_prelu(cc, w_cb0_ref, a[7], m_big_ref, s_big)
        c = conv3x3_in_prelu(c, w_cb1_ref, a[8], m_big_ref, s_big)

        # fused 1x1 prediction head of the finest level
        p0 = jnp.dot(wh0_ref[...], c,
                     preferred_element_type=jnp.float32) + bh0_ref[...]
        pred0_ref[...] = p0.reshape(pred0_ref.shape)

    return kernel


# ------------------------------- wrapper --------------------------------------
def nearest_resize_nchw(x, size):
    """Glue: F.interpolate(size=size, mode='nearest') on NCHW (integer index math)."""
    n, c, h, w = x.shape
    ho, wo = size
    hidx = (jnp.arange(ho) * h) // ho
    widx = (jnp.arange(wo) * w) // wo
    return x[:, :, hidx][:, :, :, widx]


def phiseg_decoder_forward(params, z_list, target_size=None):
    """Mirrors PHISegDecoder.forward.  z_list: [(N, latent, 16, 16), (N, latent, 8, 8)] NCHW."""
    z0, z1 = z_list
    b, cz, s_mid, _ = z0.shape
    s_small = z1.shape[2]
    s_big = 2 * s_mid
    assert s_mid == 2 * s_small and z0.shape[2] == z0.shape[3] and z1.shape[2] == z1.shape[3]
    hw_s, hw_m, hw_b = s_small * s_small, s_mid * s_mid, s_big * s_big

    # NCHW -> (N, C, H*W) is a pure reshape; pad latent channels 4 -> 8 with zeros
    # (the matching weight columns are zero, so this is exact).
    z0f = jnp.pad(z0.reshape(b, cz, hw_m), ((0, 0), (0, CIN_PAD - cz), (0, 0)))
    z1f = jnp.pad(z1.reshape(b, cz, hw_s), ((0, 0), (0, CIN_PAD - cz), (0, 0)))

    u_small = _upsample_matrix(s_small)            # (hw_s, hw_m)
    u_mid = _upsample_matrix(s_mid)                # (hw_m, hw_b)
    m_small, m_mid, m_big = _tap_masks(s_small), _tap_masks(s_mid), _tap_masks(s_big)

    wh0, bh0 = params['head0']
    wh1, bh1 = params['head1']
    replicated = [params['w_pz0_0'], params['w_pz0_1'], params['w_ri0'],
                  params['w_pz1_0'], params['w_pz1_1'], params['w_ri1'],
                  params['w_ups'], params['w_cb0'], params['w_cb1'],
                  wh0, bh0, wh1, bh1,
                  u_small, u_mid, m_small, m_mid, m_big]

    def rep_spec(arr):
        zeros = (0,) * arr.ndim
        return pl.BlockSpec(arr.shape, lambda i: zeros)

    in_specs = (
        [pl.BlockSpec((1, CIN_PAD, hw_m), lambda i: (i, 0, 0)),
         pl.BlockSpec((1, CIN_PAD, hw_s), lambda i: (i, 0, 0))]
        + [rep_spec(arr) for arr in replicated]
        + [pl.BlockSpec(memory_space=pltpu.MemorySpace.SMEM)]   # PReLU alphas
    )
    out_shape = (jax.ShapeDtypeStruct((b, N_CLASSES, hw_b), jnp.float32),
                 jax.ShapeDtypeStruct((b, N_CLASSES, hw_m), jnp.float32))
    out_specs = (pl.BlockSpec((1, N_CLASSES, hw_b), lambda i: (i, 0, 0)),
                 pl.BlockSpec((1, N_CLASSES, hw_m), lambda i: (i, 0, 0)))

    p0, p1 = pl.pallas_call(
        _make_phiseg_kernel(s_small, s_mid, s_big, _ROLL_LIKE_JNP),
        out_shape=out_shape,
        grid=(b,),
        in_specs=in_specs,
        out_specs=out_specs,
        compiler_params=pltpu.CompilerParams(
            # batch is embarrassingly parallel -> one element per TensorCore on v7x
            dimension_semantics=("parallel",)),
    )(z0f, z1f, *replicated, params['alphas'])

    preds = [p0.reshape(b, N_CLASSES, s_big, s_big),
             p1.reshape(b, N_CLASSES, s_mid, s_mid)]
    if target_size is not None:
        preds = [nearest_resize_nchw(p, target_size) for p in preds]
    return preds


# ------------------------------ parameters -----------------------------------
def init_params(key):
    fc = FEATURE_CHANNELS
    keys = iter(jax.random.split(key, 32))

    def conv_w(cin_real, cin_kernel, cout):
        # kernel layout (9, Cout, Cin_kernel) with tap index t = 3*dy + dx.
        # Padded input channels (c >= cin_real) get zero weights so the 4->8 pad is exact.
        w = jax.random.normal(next(keys), (9, cout, cin_kernel), jnp.float32)
        w = w / math.sqrt(9 * cin_real)
        if cin_kernel > cin_real:
            w = w.at[:, :, cin_real:].set(0.0)
        return w
        # (conv bias omitted: cancelled exactly by the non-affine InstanceNorm)

    def head_p(cin, cout):
        kw, kb = jax.random.split(next(keys))
        w = jax.random.normal(kw, (cout, cin), jnp.float32) / math.sqrt(cin)
        b = jax.random.normal(kb, (cout, 1), jnp.float32) * 0.01
        return (w, b)

    return {
        # level 0 (fine): post_z (latent->8, 8->8), res_inc (8->8)
        'w_pz0_0': conv_w(LATENT_DIM, CIN_PAD, fc[0]),
        'w_pz0_1': conv_w(fc[0], fc[0], fc[0]),
        'w_ri0':   conv_w(fc[0], fc[0], fc[0]),
        # level 1 (coarse): post_z (latent->16, 16->16), res_inc (16->16)
        'w_pz1_0': conv_w(LATENT_DIM, CIN_PAD, fc[1]),
        'w_pz1_1': conv_w(fc[1], fc[1], fc[1]),
        'w_ri1':   conv_w(fc[1], fc[1], fc[1]),
        # upstream: ups_conv (16->8), comb convs (16->16, 16->16)
        'w_ups':   conv_w(fc[1], fc[1], fc[0]),
        'w_cb0':   conv_w(fc[0] * 2, fc[0] * 2, fc[0 + LVL_DIFF]),
        'w_cb1':   conv_w(fc[0 + LVL_DIFF], fc[0 + LVL_DIFF], fc[0 + LVL_DIFF]),
        # 1x1 prediction heads (bias kept)
        'head0': head_p(fc[0 + LVL_DIFF], N_CLASSES),
        'head1': head_p(fc[LATENT_LEVELS - 1], N_CLASSES),
        # single-parameter PReLU slopes (PyTorch default init 0.25)
        'alphas': jnp.full((N_CONV_BLOCKS,), 0.25, jnp.float32),
    }


# -------------------- pure-JAX (XLA) reference for validation ----------------
def _reference_forward(params, z_list, target_size=None):
    def conv3x3(x, w9, alpha):
        cout, cin = w9.shape[1], w9.shape[2]
        w = jnp.transpose(w9, (1, 2, 0)).reshape(cout, cin, 3, 3)   # t=3*dy+dx -> (dy,dx)
        y = lax.conv_general_dilated(
            x, w, window_strides=(1, 1), padding=((1, 1), (1, 1)),
            dimension_numbers=('NCHW', 'OIHW', 'NCHW'),
            precision=lax.Precision.HIGHEST)
        mean = jnp.mean(y, axis=(2, 3), keepdims=True)
        var = jnp.mean(jnp.square(y - mean), axis=(2, 3), keepdims=True)
        y = (y - mean) * lax.rsqrt(var + IN_EPS)
        return jnp.maximum(y, 0.0) + alpha * jnp.minimum(y, 0.0)

    def up2x(x):  # bilinear x2, align_corners=False, NCHW
        def up1(x, axis):
            n = x.shape[axis]
            prev = jnp.concatenate([lax.slice_in_dim(x, 0, 1, axis=axis),
                                    lax.slice_in_dim(x, 0, n - 1, axis=axis)], axis=axis)
            nxt = jnp.concatenate([lax.slice_in_dim(x, 1, n, axis=axis),
                                   lax.slice_in_dim(x, n - 1, n, axis=axis)], axis=axis)
            out = jnp.stack([0.75 * x + 0.25 * prev, 0.75 * x + 0.25 * nxt], axis=axis + 1)
            shp = list(x.shape)
            shp[axis] = 2 * n
            return out.reshape(shp)
        return up1(up1(x, 2), 3)

    def head(x, p):
        w, bia = p
        y = jnp.einsum('oc,nchw->nohw', w, x, precision=lax.Precision.HIGHEST)
        return y + bia.reshape(1, -1, 1, 1)

    z0, z1 = z_list
    cz = z0.shape[1]
    pad = ((0, 0), (0, CIN_PAD - cz), (0, 0), (0, 0))
    z0p, z1p = jnp.pad(z0, pad), jnp.pad(z1, pad)
    a = params['alphas']

    x = conv3x3(z1p, params['w_pz1_0'], a[3])
    x = conv3x3(x, params['w_pz1_1'], a[4])
    post_c1 = conv3x3(up2x(x), params['w_ri1'], a[5])

    y = conv3x3(z0p, params['w_pz0_0'], a[0])
    y = conv3x3(y, params['w_pz0_1'], a[1])
    post_z0 = conv3x3(up2x(y), params['w_ri0'], a[2])

    u = conv3x3(up2x(post_c1), params['w_ups'], a[6])
    c = conv3x3(jnp.concatenate([post_z0, u], axis=1), params['w_cb0'], a[7])
    c = conv3x3(c, params['w_cb1'], a[8])

    preds = [head(c, params['head0']), head(post_c1, params['head1'])]
    if target_size is not None:
        preds = [nearest_resize_nchw(p, target_size) for p in preds]
    return preds


# --------------------------------- main ---------------------------------------
if __name__ == "__main__":
    # one-off hardware calibration (eager, before any jit trace of the decoder)
    detect_roll_convention()
    # tolerance adapted to the measured in-kernel f32 matmul precision:
    # multi-pass f32 MXU path -> ~1e-5 real error; single-pass bf16 operands -> ~1e-2.
    tol = 1e-3 if detect_mxu_f32_highprec() else 3e-2

    key = jax.random.PRNGKey(0)
    kz0, kz1 = jax.random.split(key)
    B = 2
    # z_list "from coarse index to fine": z_list[i] halves spatially as i increases.
    z0 = jax.random.normal(kz0, (B, LATENT_DIM, 16, 16), jnp.float32)
    z1 = jax.random.normal(kz1, (B, LATENT_DIM, 8, 8), jnp.float32)
    params = init_params(jax.random.PRNGKey(42))

    fwd = jax.jit(lambda p, za, zb: phiseg_decoder_forward(p, [za, zb]))
    preds = fwd(params, z0, z1)
    preds = [jax.block_until_ready(p) for p in preds]

    expected = [(B, N_CLASSES, 32, 32), (B, N_CLASSES, 16, 16)]
    assert [tuple(p.shape) for p in preds] == expected, \
        f"unexpected output shapes: {[p.shape for p in preds]}"
    assert all(bool(jnp.isfinite(p).all()) for p in preds)

    # validate the fused kernel against a pure-JAX (XLA) reference of the same forward
    ref_fwd = jax.jit(lambda p, za, zb: _reference_forward(p, [za, zb]))
    refs = [jax.block_until_ready(r) for r in ref_fwd(params, z0, z1)]
    max_diff = max(float(jnp.max(jnp.abs(p - r))) for p, r in zip(preds, refs))
    assert max_diff < tol, f"Pallas kernel deviates from reference: max|diff|={max_diff} (tol={tol})"

    print("KERNEL_OK")
</pallas_src>

<mosaic_0001>
module attributes {stable_mosaic.version = 11 : i64} {
  func.func @probe(%arg0: memref<8x128xf32, #tpu.memory_space<vmem>>, %arg1: memref<8x128xf32, #tpu.memory_space<vmem>>) attributes {dimension_semantics = [], scalar_prefetch = 0 : i64, scratch_operands = 0 : i64, tpu.core_type = #tpu.core_type<tc>} {
    %c0 = arith.constant 0 : index
    %c0_0 = arith.constant 0 : index
    %0 = vector.load %arg0[%c0, %c0_0] : memref<8x128xf32, #tpu.memory_space<vmem>>, vector<8x128xf32>
    %c1_i32 = arith.constant 1 : i32
    %1 = tpu.dynamic_rotate %0 by %c1_i32 dim 1 : vector<8x128xf32>, i32 -> vector<8x128xf32>
    %c0_1 = arith.constant 0 : index
    %c0_2 = arith.constant 0 : index
    %2 = vector.load %arg1[%c0_1, %c0_2] : memref<8x128xf32, #tpu.memory_space<vmem>>, vector<8x128xf32>
    tpu.vector_store %arg1[%c0_1, %c0_2], %1 {strides = array<i32>} : memref<8x128xf32, #tpu.memory_space<vmem>>, vector<8x128xf32>,
    return
  }
}

</mosaic_0001>

<llo_original>
// kernel: tpu_custom_call.1
$region0: #{tpu_custom_call.1}
  #allocation0 [shape = 'u32[]', space=smem, size = 0x4, offset = 0x4, fixed_abs, tag = 'smem constant byte address 0x4 - core index']
  #allocation1 [shape = 'u32[144,128]{1,0:T(1,128)}', space=vmem, size = 0x12000, scoped, tag = 'internal scratch']
  %s0 = inlined_call_operand.hbm [shape: f32[8,128], index: 0, kind: input, shape index: {}]
  %s1 = inlined_call_operand.hbm [shape: f32[8,128], index: 1, kind: output, shape index: {}]
  %s2 = sld [smem:[#allocation0]]
  $region18: #{tpu_custom_call.1} parent=0
    _
  %s4 = ssub.s32 1, %s2
  %s5 = scalar_select 0, %s4, %s2
  $region1: #{tpu_custom_call.1} parent=0
    #allocation2 [shape = 'u8[4096]{0}', space=vmem, size = 0x1000, scoped, tag = 'input window, operand 0, single buffered']
    #allocation3 [shape = 's32[1]{0}', space=sflag, size = 0x4, scoped, tag = 'scoped memory for tpu_custom_call.1']
    #allocation4 [shape = 's32[1]{0}', space=sflag, size = 0x4, scoped, tag = 'scoped memory for tpu_custom_call.1']
    #allocation5 [shape = 'u8[4096]{0}', space=vmem, size = 0x1000, scoped, tag = 'output window, operand 0, single buffered']
    %6 = vsyncpa [#allocation3], 0
    %7 = vsyncpa [#allocation4], 0
    // Predicated region
    $region2: #{tpu_custom_call.1} parent=1 // pred_check
      _
    $region3: #{tpu_custom_call.1} parent=1 // pred_check_branch
      %9 = sbr.rel (0) target = $region5
    $region4: #{tpu_custom_call.1} parent=1 // pred_region
      %s11 = ssub.s32 128, 128
      %12 = vsyncadd [#allocation3], %s11
      %s14 = sshll.u32 [#allocation2], 4
      %s15 = int_to_ptr.vmem [resolvable:$true] %s14
      %17 = dma.hbm_to_vmem [thread:$0]  %s0, 128, %s15, [#allocation3]
    $region5: #{tpu_custom_call.1} parent=1 // pred_fallthru
      _
    // Predicated region
    $region6: #{tpu_custom_call.1} parent=1 // pred_check
      _
    $region7: #{tpu_custom_call.1} parent=1 // pred_check_branch
      %19 = sbr.rel (0) target = $region9
    $region8: #{tpu_custom_call.1} parent=1 // pred_region
      %20 = dma.done [#allocation3], 128
    $region9: #{tpu_custom_call.1} parent=1 // pred_fallthru
      _
    %v21 = vld [vmem:[#allocation2] sm:$0xff]
    %22 = vrot.lane.b32.xlu0 %v21, 1
    %v23 = vpop.permute.xlu0 %22
    %24 = vst [vmem:[#allocation5] sm:$0xff] %v23
    // Predicated region
    $region10: #{tpu_custom_call.1} parent=1 // pred_check
      _
    $region11: #{tpu_custom_call.1} parent=1 // pred_check_branch
      %26 = sbr.rel (0) target = $region13
    $region12: #{tpu_custom_call.1} parent=1 // pred_region
      %s28 = ssub.s32 128, 128
      %29 = vsyncadd [#allocation4], %s28
      %s31 = sshll.u32 [#allocation5], 4
      %s32 = int_to_ptr.vmem [resolvable:$true] %s31
      %34 = dma.vmem_to_hbm [thread:$0]  %s32, 128, %s1, [#allocation4]
    $region13: #{tpu_custom_call.1} parent=1 // pred_fallthru
      _
    // Predicated region
    $region14: #{tpu_custom_call.1} parent=1 // pred_check
      _
    $region15: #{tpu_custom_call.1} parent=1 // pred_check_branch
      %36 = sbr.rel (0) target = $region17
    $region16: #{tpu_custom_call.1} parent=1 // pred_region
      %37 = dma.done [#allocation4], 128
    $region17: #{tpu_custom_call.1} parent=1 // pred_fallthru
      _
    %38 = vsyncpa [#allocation3], 1
    %39 = vsyncpa [#allocation4], 1

</llo_original>
